<compile_context>
chip_gen: v7x
topology: tpu7x:2x2x1
jax: 0.10.0
libtpu: 0.0.40
codegen_flags: <defaults>
</compile_context>

<pallas_src>
import functools

import jax
import jax.numpy as jnp
from jax import lax
from jax.experimental import pallas as pl
from jax.experimental.pallas import tpu as pltpu

_LANE = 128


def _round_up(x, m):
    return ((x + m - 1) // m) * m


def _vmem_capacity_bytes():
    # Generation-aware VMEM capacity (v5e/v6e: 128 MiB, v7x: 64 MiB per TensorCore).
    try:
        return int(pltpu.get_tpu_info().vmem_capacity_bytes)
    except Exception:
        return 64 << 20  # safe lower bound (v7x)


def _pick_stats_tiles(B, C_in, T, budget_bytes):
    """Time tile + batch rows per step for the GroupNorm statistics pass."""
    cap = _round_up(max(T, 1), _LANE)
    ts = _LANE
    for cand in (65536, 32768, 16384, 8192, 4096, 2048, 1024, 512, 256, _LANE):
        c = min(cand, cap)
        if 8 * C_in * c <= budget_bytes:            # double-buffered f32 input block
            ts = c
            break
    bb = 1
    for cand in range(2, min(B, 16) + 1):
        if (B % cand == 0 and 8 * cand * C_in * ts <= budget_bytes
                and 4 * cand * C_in * ts <= (8 << 20)):
            bb = cand
    return bb, ts


def _pick_main_tiles(B, C_in, C_out, K, stride, T_out, budget_bytes):
    """Output-time tile (multiple of 128) + batch rows per step for the fused pass."""
    cap = _round_up(max(T_out, 1), _LANE)

    def footprint(bb, t_out):
        t_in = t_out * stride
        win = t_in + 2 * _LANE
        dbuf = (8 * bb * C_in * t_in                     # main x block (x2 double-buffer)
                + 16 * bb * C_in * _LANE                 # lookbehind + lookahead blocks
                + 8 * bb * _round_up(C_in, 8) * _LANE    # stacked per-channel params
                + 4 * C_out * K * C_in                   # bf16 fused weight
                + 8 * _round_up(C_out, 8) * _LANE        # bias
                + 8 * bb * C_out * t_out)                # output block
        temps = (8 * C_in * win                          # f32 window pre/post activation
                 + 2 * C_in * win                        # bf16 stitched window
                 + 2 * K * C_in * t_out                  # bf16 im2col
                 + 4 * C_out * t_out)                    # f32 accumulator
        return dbuf + temps

    t_out = _LANE
    for cand in (4096, 2048, 1024, 512, 256, _LANE):
        c = min(cand, cap)
        if footprint(1, c) <= budget_bytes:
            t_out = c
            break
    bb = 1
    for cand in range(2, min(B, 8) + 1):
        if (B % cand == 0 and footprint(cand, t_out) <= budget_bytes
                and 4 * cand * C_in * t_out * stride <= (4 << 20)):
            bb = cand
    return bb, t_out


# ---------------------------------------------------------------------------
# Pass 1: per-(batch, channel) sum / sum-of-squares (GroupNorm statistics).
# Reads the original (unpadded) x; out-of-range columns are masked to zero.
# ---------------------------------------------------------------------------
def _gn_stats_kernel(x_ref, sum_ref, sq_ref, *, true_t, t_tile):
    s = pl.program_id(1)

    @pl.when(s == 0)
    def _():
        sum_ref[...] = jnp.zeros_like(sum_ref)
        sq_ref[...] = jnp.zeros_like(sq_ref)

    x = x_ref[...]                                                 # (Bb, C, tS) f32
    col = s * t_tile + lax.broadcasted_iota(jnp.int32, (1, 1, t_tile), 2)
    x = jnp.where(col < true_t, x, 0.0)                            # mask partial tail
    sum_ref[...] += jnp.sum(x, axis=2, keepdims=True)
    sq_ref[...] += jnp.sum(x * x, axis=2, keepdims=True)


# ---------------------------------------------------------------------------
# Pass 2: folded GroupNorm scale/shift -> Snake -> Conv1d as one fused matmul.
# The window is stitched from three 128-lane-aligned blocks of the ORIGINAL x:
# [lookbehind(128) | main(tT_in) | lookahead(128)]; masking recreates the conv's
# zero padding (and hides any clamped / partial-block garbage).
# ---------------------------------------------------------------------------
def _convblock_main_kernel(prm_ref, xb_ref, xm_ref, xa_ref, w_ref, b_ref, o_ref, *,
                           kernel_size, stride, dilation, pad_l, true_t,
                           t_out_tile, batch_tile):
    j = pl.program_id(1)
    c_in = xm_ref.shape[1]
    t_in_tile = t_out_tile * stride

    # Original-x column index carried by each position of the three blocks.
    base = j * t_in_tile
    col_b = base - _LANE + lax.broadcasted_iota(jnp.int32, (1, _LANE), 1)
    col_m = base + lax.broadcasted_iota(jnp.int32, (1, t_in_tile), 1)
    col_a = base + t_in_tile + lax.broadcasted_iota(jnp.int32, (1, _LANE), 1)

    w_mat = w_ref[...]                        # (C_out, K*C_in) bf16, resident all step
    bias = b_ref[...]                         # (C_out, 1) f32

    for bi in range(batch_tile):              # static unroll over batch rows in block
        prm = prm_ref[bi]                     # (C_in, 4) f32
        scale, shift = prm[:, 0:1], prm[:, 1:2]
        alpha, inv_alpha = prm[:, 2:3], prm[:, 3:4]

        def act(xpart, col):
            # folded GroupNorm + Snake (f32: v5e has no bf16 VPU/EUP), then zero the
            # conv-padding / out-of-range region so the fused matmul reproduces the
            # zero-padded Conv1d exactly; cast to bf16 for the MXU.
            y = xpart * scale + shift
            y = y + inv_alpha * jnp.sin(alpha * y) ** 2
            return jnp.where((col >= 0) & (col < true_t), y, 0.0).astype(jnp.bfloat16)

        # Activate each aligned block separately; stitch ONCE in bf16 (half the
        # window-copy traffic of a full f32 concatenate).
        yw = jnp.concatenate(
            [act(xb_ref[bi], col_b), act(xm_ref[bi], col_m), act(xa_ref[bi], col_a)],
            axis=-1)                                            # (C_in, tT_in+256) bf16

        # im2col along sublanes: K static-offset tap slices, one MXU matmul with
        # contraction K*C_in (bf16 operands, f32 accumulate).
        taps = []
        for k in range(kernel_size):
            off = _LANE - pad_l + k * dilation                  # static offset
            if stride == 1:
                taps.append(yw[:, off:off + t_out_tile])
            else:
                # TODO(synk): pre-split time into stride phases in the wrapper if this
                # lane-strided slice ever lowers to a slow relayout for large strides.
                taps.append(lax.slice(yw, (0, off),
                                      (c_in, off + stride * t_out_tile), (1, stride)))
        xcol = jnp.concatenate(taps, axis=0)                    # (K*C_in, tT_out) bf16
        acc = jnp.dot(w_mat, xcol, preferred_element_type=jnp.float32)
        o_ref[bi] = acc + bias                                  # lane-dense f32 store


def conv_block_1d(x, gamma, beta, alpha, w_eff, bias, *,
                  num_groups, kernel_size, stride, dilation, eps=1e-5):
    """Forward pass of ConvBlock1d (non-streaming path). x: (B, C_in, T)."""
    x = x.astype(jnp.float32)
    B, C_in, T = x.shape
    C_out = w_eff.shape[0]
    K = kernel_size
    G = num_groups

    # cached_conv "centered" padding: p = (K-1)*dilation + 1; pad = p//2 each side.
    p = (K - 1) * dilation + 1
    pad_l = pad_r = p // 2
    halo = (K - 1) * dilation
    if pad_l > _LANE or (halo - pad_l) > _LANE:
        # TODO(synk): widen the halo blocks to support (K-1)*dilation > ~2*128.
        raise NotImplementedError("conv halo larger than one 128-lane block per side")

    T_out = (T + pad_l + pad_r - dilation * (K - 1) - 1) // stride + 1

    vmem_cap = _vmem_capacity_bytes()
    vmem_limit = min((vmem_cap * 3) // 4, 112 << 20)   # ~96 MiB on v5e/v6e, ~48 on v7x
    budget = vmem_limit // 2                           # tile-picking headroom

    bS, tS = _pick_stats_tiles(B, C_in, T, budget)
    bT, tT_out = _pick_main_tiles(B, C_in, C_out, K, stride, T_out, budget)
    tT_in = tT_out * stride
    nT = -(-T_out // tT_out)
    T_out_pad = nT * tT_out
    la_blocks = tT_in // _LANE

    # No HBM pad copy of x: only if T is smaller than one time tile do we pad on
    # the right (so block_shape <= array dim); that case is tiny and negligible.
    t_min = max(tS, tT_in)
    if T < t_min:
        x_use = jnp.pad(x, ((0, 0), (0, 0), (0, t_min - T)))
    else:
        x_use = x
    T_x = x_use.shape[-1]
    nS = -(-T // tS)

    # ---- pass 1: GroupNorm statistics ------------------------------------
    stats_kernel = functools.partial(_gn_stats_kernel, true_t=T, t_tile=tS)
    stats_sum, stats_sq = pl.pallas_call(
        stats_kernel,
        out_shape=(jax.ShapeDtypeStruct((B, C_in, 1), jnp.float32),
                   jax.ShapeDtypeStruct((B, C_in, 1), jnp.float32)),
        grid_spec=pltpu.PrefetchScalarGridSpec(
            num_scalar_prefetch=0,
            grid=(B // bS, nS),
            in_specs=[pl.BlockSpec((bS, C_in, tS), lambda b, s: (b, 0, s))],
            out_specs=[pl.BlockSpec((bS, C_in, 1), lambda b, s: (b, 0, 0)),
                       pl.BlockSpec((bS, C_in, 1), lambda b, s: (b, 0, 0))],
        ),
        compiler_params=pltpu.CompilerParams(
            dimension_semantics=("parallel", "arbitrary"),
            vmem_limit_bytes=vmem_limit),
        cost_estimate=pl.CostEstimate(
            flops=3 * B * C_in * T, transcendentals=0,
            bytes_accessed=4 * B * C_in * T_x),
    )(x_use)

    # Tiny per-(B, C) group combine + gamma/beta fold (plumbing-scale math).
    # NOTE: E[x^2]-E[x]^2 with f32 accumulation; fine at audio scales.
    # TODO(synk): shifted / Welford-style group combine for very long sequences.
    n_elems = (C_in // G) * T
    gsum = stats_sum.reshape(B, G, C_in // G).sum(axis=2)
    gsq = stats_sq.reshape(B, G, C_in // G).sum(axis=2)
    mean = gsum / n_elems
    var = jnp.maximum(gsq / n_elems - mean * mean, 0.0)
    rstd = lax.rsqrt(var + eps)
    mean_c = jnp.repeat(mean, C_in // G, axis=1)                        # (B, C)
    rstd_c = jnp.repeat(rstd, C_in // G, axis=1)
    scale = gamma[None, :] * rstd_c
    shift = beta[None, :] - mean_c * gamma[None, :] * rstd_c
    alpha_b = jnp.broadcast_to(alpha[None, :], (B, C_in))
    inv_alpha_b = 1.0 / (alpha_b + 1e-9)                                # precomputed
    # One stacked per-channel operand instead of four tiny DMAs: (B, C_in, 4).
    params = jnp.stack([scale, shift, alpha_b, inv_alpha_b], axis=-1).astype(jnp.float32)

    # Fused conv weight: (C_out, C_in, K) -> (C_out, K*C_in), bf16 MXU operand.
    w2 = jnp.transpose(w_eff, (0, 2, 1)).reshape(C_out, K * C_in).astype(jnp.bfloat16)
    bias2 = bias.reshape(C_out, 1).astype(jnp.float32)

    max_main_blk = max((T_x - 1) // tT_in, 0)
    max_lane_blk = max((T_x - 1) // _LANE, 0)

    kernel = functools.partial(
        _convblock_main_kernel,
        kernel_size=K, stride=stride, dilation=dilation,
        pad_l=pad_l, true_t=T, t_out_tile=tT_out, batch_tile=bT)

    # ---- pass 2: scale/shift + Snake + fused conv, tiled over (B-groups, time) ----
    out_pad = pl.pallas_call(
        kernel,
        out_shape=jax.ShapeDtypeStruct((B, C_out, T_out_pad), jnp.float32),
        grid_spec=pltpu.PrefetchScalarGridSpec(
            num_scalar_prefetch=0,
            grid=(B // bT, nT),
            in_specs=[
                pl.BlockSpec((bT, C_in, 4), lambda b, j: (b, 0, 0)),       # GN/Snake params
                pl.BlockSpec((bT, C_in, _LANE),                            # lookbehind halo
                             lambda b, j: (b, 0, jnp.minimum(
                                 jnp.maximum(j * la_blocks - 1, 0), max_lane_blk))),
                pl.BlockSpec((bT, C_in, tT_in),                            # main x tile
                             lambda b, j: (b, 0, jnp.minimum(j, max_main_blk))),
                pl.BlockSpec((bT, C_in, _LANE),                            # lookahead halo
                             lambda b, j: (b, 0, jnp.minimum(
                                 (j + 1) * la_blocks, max_lane_blk))),
                pl.BlockSpec((C_out, K * C_in), lambda b, j: (0, 0)),      # fused weight (bf16)
                pl.BlockSpec((C_out, 1), lambda b, j: (0, 0)),             # bias
            ],
            out_specs=pl.BlockSpec((bT, C_out, tT_out), lambda b, j: (b, 0, j)),
        ),
        compiler_params=pltpu.CompilerParams(
            dimension_semantics=("parallel", "parallel"),
            vmem_limit_bytes=vmem_limit),
        cost_estimate=pl.CostEstimate(
            flops=2 * B * C_out * K * C_in * T_out_pad,
            transcendentals=B * C_in * (tT_in + 2 * _LANE) * nT,
            bytes_accessed=(4 * B * C_in * (T_x + 2 * nT * _LANE)
                            + 2 * C_out * K * C_in
                            + 4 * B * C_out * T_out_pad)),
    )(params, x_use, x_use, x_use, w2, bias2)

    if T_out_pad == T_out:
        return out_pad
    return out_pad[:, :, :T_out]


def _reference(x, gamma, beta, alpha, w_eff, bias, *,
               num_groups, kernel_size, stride, dilation, eps=1e-5):
    B, C, T = x.shape
    G = num_groups
    xg = x.reshape(B, G, (C // G) * T)
    mean = xg.mean(axis=2, keepdims=True)
    var = ((xg - mean) ** 2).mean(axis=2, keepdims=True)
    xn = ((xg - mean) / jnp.sqrt(var + eps)).reshape(B, C, T)
    y = xn * gamma[None, :, None] + beta[None, :, None]
    a = alpha[None, :, None]
    y = y + (1.0 / (a + 1e-9)) * jnp.sin(a * y) ** 2
    p = (kernel_size - 1) * dilation + 1
    pad = p // 2
    out = lax.conv_general_dilated(
        y, w_eff, window_strides=(stride,), padding=[(pad, pad)],
        rhs_dilation=(dilation,),
        dimension_numbers=("NCH", "OIH", "NCH"))
    return out + bias[None, :, None]


if __name__ == "__main__":
    # Module config (small, consistent with ConvBlock1d defaults).
    B, C_in, C_out, T = 2, 8, 16, 16
    kernel_size, stride, dilation, num_groups_cfg = 3, 1, 1, 8
    num_groups = min(C_in, num_groups_cfg)

    key = jax.random.PRNGKey(0)
    kx, kv, kb = jax.random.split(key, 3)

    x = jax.random.normal(kx, (B, C_in, T), dtype=jnp.float32)

    # GroupNorm affine params (default init: weight=1, bias=0).
    gamma = jnp.ones((C_in,), jnp.float32)
    beta = jnp.zeros((C_in,), jnp.float32)

    # Snake per-channel alpha (default init: ones).
    alpha = jnp.ones((C_in,), jnp.float32)

    # Weight-normed Conv1d: w = g * v / ||v|| (norm over (in, k) per out-channel).
    v = 0.1 * jax.random.normal(kv, (C_out, C_in, kernel_size), dtype=jnp.float32)
    v_norm = jnp.sqrt(jnp.sum(v * v, axis=(1, 2), keepdims=True))
    g = v_norm  # PyTorch weight_norm init sets g = ||v||
    w_eff = g * v / v_norm
    bias = 0.1 * jax.random.normal(kb, (C_out,), dtype=jnp.float32)

    out = conv_block_1d(
        x, gamma, beta, alpha, w_eff, bias,
        num_groups=num_groups, kernel_size=kernel_size,
        stride=stride, dilation=dilation)
    out = jax.block_until_ready(out)

    ref = _reference(
        x, gamma, beta, alpha, w_eff, bias,
        num_groups=num_groups, kernel_size=kernel_size,
        stride=stride, dilation=dilation)

    assert out.shape == ref.shape, (out.shape, ref.shape)
    # bf16 MXU operands -> slightly loosened tolerance.
    max_err = float(jnp.max(jnp.abs(out - ref)))
    assert jnp.allclose(out, ref, atol=2e-2, rtol=2e-2), max_err
    print("KERNEL_OK")
</pallas_src>

<mosaic_0001>
module attributes {stable_mosaic.version = 11 : i64} {
  func.func @_gn_stats_kernel(%arg0: i32, %arg1: i32, %arg2: memref<2x8x128xf32, #tpu.memory_space<vmem>>, %arg3: memref<2x8x1xf32, #tpu.memory_space<vmem>>, %arg4: memref<2x8x1xf32, #tpu.memory_space<vmem>>) attributes {dimension_semantics = [#tpu.dimension_semantics<parallel>, #tpu.dimension_semantics<arbitrary>], iteration_bounds = array<i64: 1, 1>, scalar_prefetch = 0 : i64, scratch_operands = 0 : i64, tpu.core_type = #tpu.core_type<tc>, window_params = [{transform_indices = @transform_0, window_bounds = array<i64: 2, 8, 128>}, {transform_indices = @transform_1, window_bounds = array<i64: 2, 8, 1>}, {transform_indices = @transform_2, window_bounds = array<i64: 2, 8, 1>}]} {
    %c0_i32 = arith.constant 0 : i32
    %0 = arith.cmpi eq, %arg1, %c0_i32 : i32
    %1 = arith.extui %0 : i1 to i32
    %c0_i32_0 = arith.constant 0 : i32
    %2 = arith.cmpi ne, %1, %c0_i32_0 : i32
    scf.if %2 {
      %cst_17 = arith.constant 0.000000e+00 : f32
      %25 = vector.broadcast %cst_17 : f32 to vector<2x8x1xf32>
      %c0_18 = arith.constant 0 : index
      %c0_19 = arith.constant 0 : index
      %c0_20 = arith.constant 0 : index
      %26 = vector.load %arg3[%c0_18, %c0_19, %c0_20] : memref<2x8x1xf32, #tpu.memory_space<vmem>>, vector<2x8x1xf32>
      tpu.vector_store %arg3[%c0_18, %c0_19, %c0_20], %25 {strides = array<i32>} : memref<2x8x1xf32, #tpu.memory_space<vmem>>, vector<2x8x1xf32>,
      %cst_21 = arith.constant 0.000000e+00 : f32
      %27 = vector.broadcast %cst_21 : f32 to vector<2x8x1xf32>
      %c0_22 = arith.constant 0 : index
      %c0_23 = arith.constant 0 : index
      %c0_24 = arith.constant 0 : index
      %28 = vector.load %arg4[%c0_22, %c0_23, %c0_24] : memref<2x8x1xf32, #tpu.memory_space<vmem>>, vector<2x8x1xf32>
      tpu.vector_store %arg4[%c0_22, %c0_23, %c0_24], %27 {strides = array<i32>} : memref<2x8x1xf32, #tpu.memory_space<vmem>>, vector<2x8x1xf32>,
    } else {
    }
    %c0 = arith.constant 0 : index
    %c0_1 = arith.constant 0 : index
    %c0_2 = arith.constant 0 : index
    %3 = vector.load %arg2[%c0, %c0_1, %c0_2] : memref<2x8x128xf32, #tpu.memory_space<vmem>>, vector<2x8x128xf32>
    %c128_i32 = arith.constant 128 : i32
    %4 = arith.muli %arg1, %c128_i32 : i32
    %5 = tpu.iota {dimensions = array<i32: 2>} : vector<1x1x128xi32>
    %6 = vector.broadcast %4 : i32 to vector<1x1x128xi32>
    %7 = arith.addi %6, %5 : vector<1x1x128xi32>
    %c16_i32 = arith.constant 16 : i32
    %8 = vector.broadcast %c16_i32 : i32 to vector<1x1x128xi32>
    %9 = arith.cmpi slt, %7, %8 : vector<1x1x128xi32>
    %cst = arith.constant 0.000000e+00 : f32
    %10 = vector.shape_cast %9 : vector<1x1x128xi1> to vector<1x1x128xi1>
    %11 = vector.broadcast %10 : vector<1x1x128xi1> to vector<2x8x128xi1>
    %12 = vector.broadcast %cst : f32 to vector<2x8x128xf32>
    %13 = arith.select %11, %3, %12 : vector<2x8x128xi1>, vector<2x8x128xf32>
    %c0_3 = arith.constant 0 : index
    %c0_4 = arith.constant 0 : index
    %c0_5 = arith.constant 0 : index
    %14 = vector.load %arg3[%c0_3, %c0_4, %c0_5] : memref<2x8x1xf32, #tpu.memory_space<vmem>>, vector<2x8x1xf32>
    %cst_6 = arith.constant dense<0.000000e+00> : vector<2x8xf32>
    %15 = vector.multi_reduction <add>, %13, %cst_6 [2] : vector<2x8x128xf32> to vector<2x8xf32>
    %16 = vector.shape_cast %15 : vector<2x8xf32> to vector<2x8x1xf32>
    %17 = arith.addf %14, %16 : vector<2x8x1xf32>
    %c0_7 = arith.constant 0 : index
    %c0_8 = arith.constant 0 : index
    %c0_9 = arith.constant 0 : index
    %18 = vector.load %arg3[%c0_7, %c0_8, %c0_9] : memref<2x8x1xf32, #tpu.memory_space<vmem>>, vector<2x8x1xf32>
    tpu.vector_store %arg3[%c0_7, %c0_8, %c0_9], %17 {strides = array<i32>} : memref<2x8x1xf32, #tpu.memory_space<vmem>>, vector<2x8x1xf32>,
    %c0_10 = arith.constant 0 : index
    %c0_11 = arith.constant 0 : index
    %c0_12 = arith.constant 0 : index
    %19 = vector.load %arg4[%c0_10, %c0_11, %c0_12] : memref<2x8x1xf32, #tpu.memory_space<vmem>>, vector<2x8x1xf32>
    %20 = arith.mulf %13, %13 : vector<2x8x128xf32>
    %cst_13 = arith.constant dense<0.000000e+00> : vector<2x8xf32>
    %21 = vector.multi_reduction <add>, %20, %cst_13 [2] : vector<2x8x128xf32> to vector<2x8xf32>
    %22 = vector.shape_cast %21 : vector<2x8xf32> to vector<2x8x1xf32>
    %23 = arith.addf %19, %22 : vector<2x8x1xf32>
    %c0_14 = arith.constant 0 : index
    %c0_15 = arith.constant 0 : index
    %c0_16 = arith.constant 0 : index
    %24 = vector.load %arg4[%c0_14, %c0_15, %c0_16] : memref<2x8x1xf32, #tpu.memory_space<vmem>>, vector<2x8x1xf32>
    tpu.vector_store %arg4[%c0_14, %c0_15, %c0_16], %23 {strides = array<i32>} : memref<2x8x1xf32, #tpu.memory_space<vmem>>, vector<2x8x1xf32>,
    return
  }
  func.func @transform_0(%arg0: i32, %arg1: i32) -> (i32, i32, i32) {
    %c0_i32 = arith.constant 0 : i32
    %c0_i32_0 = arith.constant 0 : i32
    return %arg0, %c0_i32, %arg1 : i32, i32, i32
  }
  func.func @transform_1(%arg0: i32, %arg1: i32) -> (i32, i32, i32) {
    %c0_i32 = arith.constant 0 : i32
    %c0_i32_0 = arith.constant 0 : i32
    %c0_i32_1 = arith.constant 0 : i32
    return %arg0, %c0_i32, %c0_i32_0 : i32, i32, i32
  }
  func.func @transform_2(%arg0: i32, %arg1: i32) -> (i32, i32, i32) {
    %c0_i32 = arith.constant 0 : i32
    %c0_i32_0 = arith.constant 0 : i32
    %c0_i32_1 = arith.constant 0 : i32
    return %arg0, %c0_i32, %c0_i32_0 : i32, i32, i32
  }
}

</mosaic_0001>

<llo_original>
// kernel: tpu_custom_call.1
$region0: #{tpu_custom_call.1}
  #allocation0 [shape = 'u32[]', space=smem, size = 0x4, offset = 0x4, fixed_abs, tag = 'smem constant byte address 0x4 - core index']
  #allocation1 [shape = 'u32[144,128]{1,0:T(1,128)}', space=vmem, size = 0x12000, scoped, tag = 'internal scratch']
  %s0 = inlined_call_operand.hbm [shape: f32[2,8,128], index: 0, kind: input, shape index: {}]
  %s1 = inlined_call_operand.vmem [shape: f32[2,8,1], index: 1, kind: output, shape index: {0}]
  %s2 = inlined_call_operand.vmem [shape: f32[2,8,1], index: 2, kind: output, shape index: {1}]
  %3 = xla_tuple %s1, %s2
  %s4 = sld [smem:[#allocation0]]
  $region30: #{tpu_custom_call.1} parent=0
    _
  %s6 = ssub.s32 1, %s4
  %s7 = scalar_select 0, %s6, %s4
  $region1: #{tpu_custom_call.1} parent=0
    #allocation2 [shape = 'u8[8192]{0}', space=vmem, size = 0x2000, scoped, tag = 'input window, operand 0, single buffered']
    #allocation3 [shape = 's32[1]{0}', space=sflag, size = 0x4, scoped, tag = 'scoped memory for tpu_custom_call.1']
    %8 = vsyncpa [#allocation3], 0
    // Predicated region
    $region2: #{tpu_custom_call.1} parent=1 // pred_check
      _
    $region3: #{tpu_custom_call.1} parent=1 // pred_check_branch
      %10 = sbr.rel (0) target = $region5
    $region4: #{tpu_custom_call.1} parent=1 // pred_region
      %s12 = ssub.s32 256, 256
      %13 = vsyncadd [#allocation3], %s12
      %s14 = sshll.u32 [#allocation2], 4
      %s15 = int_to_ptr.vmem [resolvable:$true] %s14
      %20 = dma.hbm_to_vmem [thread:$0]  %s0, 256, %s15, [#allocation3], 128, 128, 8
    $region5: #{tpu_custom_call.1} parent=1 // pred_fallthru
      _
    // Predicated region
    $region6: #{tpu_custom_call.1} parent=1 // pred_check
      _
    $region7: #{tpu_custom_call.1} parent=1 // pred_check_branch
      %22 = sbr.rel (0) target = $region9
    $region8: #{tpu_custom_call.1} parent=1 // pred_region
      %23 = dma.done [#allocation3], 256
    $region9: #{tpu_custom_call.1} parent=1 // pred_fallthru
      _
    %p24 = scmp.eq.s32.totalorder 0, 0
    // Predicated region
    $region10: #{tpu_custom_call.1} parent=1 // pred_check
      %p25 = pneg %p24
    $region11: #{tpu_custom_call.1} parent=1 // pred_check_branch
      %27 = sbr.rel (%p25) target = $region13
    $region12: #{tpu_custom_call.1} parent=1 // pred_region
      %vm28 = vcmask 7168
      %29 = vst.msk [vmem:[%s1] sm:$0xff] %vm28, 0.0
      %30 = vst.msk [vmem:[%s1 + $0x8] sm:$0xff] %vm28, 0.0
      %31 = vst.msk [vmem:[%s2] sm:$0xff] %vm28, 0.0
      %32 = vst.msk [vmem:[%s2 + $0x8] sm:$0xff] %vm28, 0.0
    $region13: #{tpu_custom_call.1} parent=1 // pred_fallthru
      _
    %v33 = vld [vmem:[#allocation2] sm:$0xff]
    %v34 = vld [vmem:[#allocation2 + $0x8] sm:$0xff]
    %s35 = smul.u32 0, 128
    %v36 = vlaneseq
    %v37 = vand.u32 %v36, 127
    %v38 = vstv %s35
    %v39 = vadd.s32 %v38, %v37
    %vm40 = vcmp.lt.s32.totalorder %v39, 16
    %v41 = vsel %vm40, 1, 0
    %vm42 = vcmp.eq.s32.totalorder %v41, 1
    %v43 = vsel %vm42, %v33, 0.0
    %v44 = vsel %vm42, %v34, 0.0
    %v45 = vld [vmem:[%s1] sm:$0xff]
    %v46 = vld [vmem:[%s1 + $0x8] sm:$0xff]
    %47 = vadd.xlane.f32.xlu0 %v43
    %v48 = vpop.xlane.xlu0 %47
    %49 = vadd.xlane.f32.xlu0 %v44
    %v50 = vpop.xlane.xlu0 %49
    %v51 = vadd.f32 %v45, %v48
    %v52 = vadd.f32 %v46, %v50
    %vm53 = vcmask 7168
    %54 = vst.msk [vmem:[%s1] sm:$0xff] %vm53, %v51
    %55 = vst.msk [vmem:[%s1 + $0x8] sm:$0xff] %vm53, %v52
    %v56 = vld [vmem:[%s2] sm:$0xff]
    %v57 = vld [vmem:[%s2 + $0x8] sm:$0xff]
    %v58 = vmul.f32 %v43, %v43
    %v59 = vmul.f32 %v44, %v44
    %60 = vadd.xlane.f32.xlu0 %v58
    %v61 = vpop.xlane.xlu0 %60
    %62 = vadd.xlane.f32.xlu0 %v59
    %v63 = vpop.xlane.xlu0 %62
    %v64 = vadd.f32 %v56, %v61
    %v65 = vadd.f32 %v57, %v63
    %66 = vst.msk [vmem:[%s2] sm:$0xff] %vm53, %v64
    %67 = vst.msk [vmem:[%s2 + $0x8] sm:$0xff] %vm53, %v65
    // Predicated region
    $region14: #{tpu_custom_call.1} parent=1 // pred_check
      _
    $region15: #{tpu_custom_call.1} parent=1 // pred_check_branch
      %69 = sbr.rel (0) target = $region17
    $region16: #{tpu_custom_call.1} parent=1 // pred_region
      _
    $region17: #{tpu_custom_call.1} parent=1 // pred_fallthru
      _
    // Predicated region
    $region18: #{tpu_custom_call.1} parent=1 // pred_check
      _
    $region19: #{tpu_custom_call.1} parent=1 // pred_check_branch
      %71 = sbr.rel (0) target = $region21
    $region20: #{tpu_custom_call.1} parent=1 // pred_region
      _
    $region21: #{tpu_custom_call.1} parent=1 // pred_fallthru
      _
    // Predicated region
    $region22: #{tpu_custom_call.1} parent=1 // pred_check
      _
    $region23: #{tpu_custom_call.1} parent=1 // pred_check_branch
      %73 = sbr.rel (0) target = $region25
    $region24: #{tpu_custom_call.1} parent=1 // pred_region
      _
    $region25: #{tpu_custom_call.1} parent=1 // pred_fallthru
      _
    // Predicated region
    $region26: #{tpu_custom_call.1} parent=1 // pred_check
      _
    $region27: #{tpu_custom_call.1} parent=1 // pred_check_branch
      %75 = sbr.rel (0) target = $region29
    $region28: #{tpu_custom_call.1} parent=1 // pred_region
      _
    $region29: #{tpu_custom_call.1} parent=1 // pred_fallthru
      _
    %76 = vsyncpa [#allocation3], 1

</llo_original>
